<compile_context>
chip_gen: v5e
topology: v5e:2x2
jax: 0.10.0
libtpu: 0.0.40
codegen_flags: <defaults>
</compile_context>

<pallas_src>
import functools
import math

import jax
import jax.numpy as jnp
import numpy as np
from jax import lax
from jax.experimental import pallas as pl
from jax.experimental.pallas import tpu as pltpu


# ----------------------------------------------------------------------------
# Small helpers.
# ----------------------------------------------------------------------------
def _round_up(x, m):
    return ((x + m - 1) // m) * m


def _pick_tile(dim, target, minimum):
    """Largest multiple-of-`minimum` divisor of `dim` that is <= target, else full dim."""
    t = min(target, dim)
    t -= t % minimum
    while t >= minimum:
        if dim % t == 0:
            return t
        t -= minimum
    return dim


@functools.lru_cache(maxsize=None)
def _vmem_limit_bytes():
    """Generation-aware scoped-VMEM limit (v5e/v6e ~100 MiB of 128; v7x ~54 of 64)."""
    default = 48 * 1024 * 1024
    try:
        cap = getattr(pltpu.get_tpu_info(), "vmem_capacity_bytes", None)
    except Exception:
        return default
    if not cap:
        return default
    return int(min(cap * 0.85, 100 * 1024 * 1024))


def _default_batch_block(B):
    """Full batch on single-TC chips (v5e/v6e); 2-way split only on multi-TC chips
    when each half still feeds the 256-wide MXU (TB >= 64)."""
    try:
        kind = jax.devices()[0].device_kind.lower()
    except Exception:
        kind = ""
    multi_tc = any(tag in kind for tag in ("v7", "7x", "v4"))
    if multi_tc and B % 16 == 0 and B // 2 >= 64:
        return B // 2
    return B


# ----------------------------------------------------------------------------
# Generic tiled matmul-with-bias kernel (used for the two hoisted projections).
# ----------------------------------------------------------------------------
def _matmul_bias_kernel(x_ref, w_ref, b_ref, o_ref, acc_ref):
    k = pl.program_id(2)

    @pl.when(k == 0)
    def _():
        acc_ref[...] = jnp.zeros_like(acc_ref)

    acc_ref[...] += jnp.dot(x_ref[...], w_ref[...],
                            preferred_element_type=jnp.float32)

    @pl.when(k == pl.num_programs(2) - 1)
    def _():
        o_ref[...] = (acc_ref[...] + b_ref[...]).astype(o_ref.dtype)


def matmul_bias(x, w, b, *, compute_dtype=jnp.bfloat16, out_dtype=jnp.float32,
                tm=512, tn=512, tk=512):
    """y = x @ w + b with MXU-friendly tiling.  x:(M,K) w:(K,N) b:(1,N) -> (M,N)."""
    M, K = x.shape
    K2, N = w.shape
    assert K == K2 and b.shape == (1, N)

    # Pad to sublane/lane-aligned shapes: avoids a full-dim tile fallback (VMEM
    # blowups for e.g. vocab=10000) and keeps output stores lane-dense
    # (unmasked vst).  Zero padding is numerically exact; result is sliced back.
    Mp = _round_up(M, 8)
    Np = _round_up(N, 128)
    Kp = K if K <= 128 else _round_up(K, 128)

    xc = x.astype(compute_dtype)
    wc = w.astype(compute_dtype)
    bc = b.astype(jnp.float32)
    if (Mp, Kp) != (M, K):
        xc = jnp.pad(xc, ((0, Mp - M), (0, Kp - K)))
    if (Kp, Np) != (K, N):
        wc = jnp.pad(wc, ((0, Kp - K), (0, Np - N)))
    if Np != N:
        bc = jnp.pad(bc, ((0, 0), (0, Np - N)))

    tm = _pick_tile(Mp, tm, 8)       # sublane-aligned rows
    tn = _pick_tile(Np, tn, 128)     # lane-dense output columns
    tk = _pick_tile(Kp, tk, 128)

    cost = pl.CostEstimate(
        flops=int(2 * Mp * Np * Kp),
        transcendentals=0,
        bytes_accessed=int(xc.size * xc.dtype.itemsize
                           + wc.size * wc.dtype.itemsize
                           + bc.size * 4
                           + Mp * Np * jnp.dtype(out_dtype).itemsize),
    )

    out = pl.pallas_call(
        _matmul_bias_kernel,
        out_shape=jax.ShapeDtypeStruct((Mp, Np), out_dtype),
        grid=(Mp // tm, Np // tn, Kp // tk),
        in_specs=[
            pl.BlockSpec((tm, tk), lambda i, j, k: (i, k)),
            pl.BlockSpec((tk, tn), lambda i, j, k: (k, j)),
            pl.BlockSpec((1, tn), lambda i, j, k: (0, j)),
        ],
        out_specs=pl.BlockSpec((tm, tn), lambda i, j, k: (i, j)),
        scratch_shapes=[pltpu.VMEM((tm, tn), jnp.float32)],
        compiler_params=pltpu.CompilerParams(
            dimension_semantics=("parallel", "parallel", "arbitrary"),
            vmem_limit_bytes=_vmem_limit_bytes()),
        cost_estimate=cost,
    )(xc, wc, bc)

    if (Mp, Np) != (M, N):
        out = out[:M, :N]
    return out


# ----------------------------------------------------------------------------
# Recurrent kernel: stacked tanh layers over a chunk of timesteps.
# ----------------------------------------------------------------------------
def _rnn_recurrence_kernel(xproj_ref, h0_ref, w_hh0_ref, w_cat_ref, b_rest_ref,
                           htop_ref, hfin_ref, h_scr,
                           *, num_layers, time_chunk, inner_unroll, compute_dtype):
    t_chunk = pl.program_id(1)            # sequential ("arbitrary") time axis
    cd = compute_dtype

    # Load the initial hidden state for this batch block on the first chunk.
    @pl.when(t_chunk == 0)
    def _():
        h_scr[...] = h0_ref[...]

    # Hoist the small bias loads out of the unrolled time loop (JAX doesn't CSE).
    b_loc = [b_rest_ref[i] for i in range(num_layers - 1)]        # each (1, H) f32

    def step(tc):
        # Layer 0: x @ W_ih0 + b_hh0 was hoisted out of the kernel (xproj holds
        # it); only the recurrent matmul remains inside the serial loop.
        pre0 = xproj_ref[tc] + jnp.dot(h_scr[0].astype(cd), w_hh0_ref[...],
                                       preferred_element_type=jnp.float32)
        h = jnp.tanh(pre0)
        h_scr[0] = h
        h_cd = h.astype(cd)
        for i in range(1, num_layers):
            # One fused MXU push per layer: [h_below ; h_prev] @ [W_ih ; W_hh].
            lhs = jnp.concatenate([h_cd, h_scr[i].astype(cd)], axis=-1)
            pre = jnp.dot(lhs, w_cat_ref[i - 1],
                          preferred_element_type=jnp.float32) + b_loc[i - 1]
            h = jnp.tanh(pre)
            h_scr[i] = h
            h_cd = h.astype(cd)
        htop_ref[tc] = h_cd.astype(htop_ref.dtype)   # top-layer hidden state

    # Partial unroll: dynamic outer loop + statically-unrolled inner block keeps
    # LLO-scheduler visibility without a giant, spill-prone basic block.
    @pl.loop(0, time_chunk // inner_unroll)
    def _(blk):
        base = blk * inner_unroll
        for j in range(inner_unroll):
            step(base + j)

    # Emit final hidden states for this batch block on the last time chunk.
    @pl.when(t_chunk == pl.num_programs(1) - 1)
    def _():
        hfin_ref[...] = h_scr[...]


# ----------------------------------------------------------------------------
# Forward pass wrapper.
# ----------------------------------------------------------------------------
def rnn_forward(tokens, hidden, params, *, seq_len, batch_size, vocab_size,
                emb_size, hidden_size, num_layers,
                time_chunk=None, batch_block=None,
                matmul_dtype=jnp.bfloat16):
    """Runs the RNN forward pass. Returns (logits (T,B,V), final_hidden (L,B,H))."""
    T, B, E = seq_len, batch_size, emb_size
    H, V, L = hidden_size, vocab_size, num_layers
    assert L >= 2, "this wrapper packs layers 1..L-1 weights together"

    stream_dtype = matmul_dtype       # dtype of the x_proj / h_top HBM streams

    if batch_block is None:
        batch_block = _default_batch_block(B)
    assert B % batch_block == 0 and (batch_block % 8 == 0 or batch_block == B)
    TB = batch_block

    if time_chunk is None:
        # Size the time chunk so 2x(in)+2x(out) stream buffers + single-buffered
        # weights + f32 state fit the generation's VMEM (re-derived for v7x's 64 MiB).
        sb = jnp.dtype(stream_dtype).itemsize
        wb = jnp.dtype(matmul_dtype).itemsize
        fixed = ((2 * L - 1) * H * H * wb        # single-buffered weights
                 + (L - 1) * H * 4               # biases
                 + 3 * L * TB * H * 4)           # h0 buffers + f32 scratch
        budget = max(_vmem_limit_bytes() - fixed - (8 << 20), 4 << 20)
        per_t = 4 * TB * H * sb                  # double-buffered in+out per step
        cap = max(int(budget // per_t), 1)
        time_chunk = _pick_tile(T, min(32, cap), 1)
    assert T % time_chunk == 0
    TC = time_chunk
    inner = next(u for u in (8, 4, 2, 1) if TC % u == 0)

    # 1/2) Hoisted layer-0 input projection (b_hh[0] folded in).
    #      Dropout = identity (dp_keep_prob = 1).
    b_hh0 = params["b_hh"][0]                                     # (1, H)
    if T * B > V:
        # Project the embedding table once, then gather rows (same math).
        table = matmul_bias(params["embedding"], params["w_ih0"], b_hh0,
                            compute_dtype=matmul_dtype, out_dtype=stream_dtype)
        xproj = table[tokens]                                     # (T, B, H)
    else:
        emb = params["embedding"][tokens].reshape(T * B, E)
        xproj = matmul_bias(emb, params["w_ih0"], b_hh0,
                            compute_dtype=matmul_dtype,
                            out_dtype=stream_dtype).reshape(T, B, H)

    # 3) Recurrent kernel over (batch blocks, time chunks).
    w_hh0 = params["w_hh"][0].astype(matmul_dtype)                # (H, H)
    w_cat = jnp.concatenate([params["w_ih_rest"], params["w_hh"][1:]],
                            axis=1).astype(matmul_dtype)          # (L-1, 2H, H)
    b_rest = params["b_hh"][1:].astype(jnp.float32)               # (L-1, 1, H)
    hidden_f32 = hidden.astype(jnp.float32)

    kernel = functools.partial(_rnn_recurrence_kernel, num_layers=L,
                               time_chunk=TC, inner_unroll=inner,
                               compute_dtype=matmul_dtype)
    sbytes = jnp.dtype(stream_dtype).itemsize
    wbytes = jnp.dtype(matmul_dtype).itemsize
    cost = pl.CostEstimate(
        flops=int(2 * T * B * H * H * (2 * L - 1)),
        transcendentals=int(T * B * H * L),
        bytes_accessed=int(2 * T * B * H * sbytes             # xproj read + htop write
                           + 2 * L * B * H * 4                # h0 read + hfin write
                           + (w_hh0.size + w_cat.size) * wbytes
                           + b_rest.size * 4),
    )

    def _call_recurrence(single_buffer_weights):
        def wspec(shape):
            nd = len(shape)
            if single_buffer_weights:
                # Constant block index -> second pipeline buffer is pure VMEM waste.
                return pl.BlockSpec(shape, lambda b, t: (0,) * nd,
                                    pipeline_mode=pl.Buffered(1))
            return pl.BlockSpec(shape, lambda b, t: (0,) * nd)

        return pl.pallas_call(
            kernel,
            out_shape=(
                jax.ShapeDtypeStruct((T, B, H), stream_dtype),    # top-layer h per step
                jax.ShapeDtypeStruct((L, B, H), jnp.float32),     # final hidden
            ),
            grid=(B // TB, T // TC),
            in_specs=[
                pl.BlockSpec((TC, TB, H), lambda b, t: (t, b, 0)),    # x_proj chunk
                pl.BlockSpec((L, TB, H), lambda b, t: (0, b, 0)),     # initial hidden
                wspec((H, H)),                                        # W_hh layer 0
                wspec((L - 1, 2 * H, H)),                             # fused [W_ih ; W_hh]
                wspec((L - 1, 1, H)),                                 # b_hh layers 1..L-1
            ],
            out_specs=(
                pl.BlockSpec((TC, TB, H), lambda b, t: (t, b, 0)),    # h_top chunk
                pl.BlockSpec((L, TB, H), lambda b, t: (0, b, 0)),     # final hidden (resident)
            ),
            scratch_shapes=[pltpu.VMEM((L, TB, H), jnp.float32)],
            compiler_params=pltpu.CompilerParams(
                dimension_semantics=("parallel", "arbitrary"),
                vmem_limit_bytes=_vmem_limit_bytes()),
            cost_estimate=cost,
        )(xproj, hidden_f32, w_hh0, w_cat, b_rest)

    try:
        htop, h_final = _call_recurrence(True)
        jax.block_until_ready((htop, h_final))
    except Exception:
        # TODO(synk): pipeline_mode=pl.Buffered(1) unsupported on this build;
        # fall back to default double-buffered weight blocks.
        htop, h_final = _call_recurrence(False)

    # 4) Hoisted vocab projection: one big (T*B, H) x (H, V) matmul + bias.
    logits = matmul_bias(htop.reshape(T * B, H), params["w_out"], params["b_out"],
                         compute_dtype=matmul_dtype, out_dtype=jnp.float32,
                         tm=1024, tn=512).reshape(T, B, V)
    return logits, h_final


# ----------------------------------------------------------------------------
# Pure-JAX reference (mirrors the PyTorch forward, dropout = identity).
# ----------------------------------------------------------------------------
def rnn_reference(tokens, hidden, params, *, seq_len, num_layers):
    emb = params["embedding"][tokens].astype(jnp.float32)
    hs = [hidden[i] for i in range(num_layers)]
    logits_list = []
    for t in range(seq_len):
        h_in = emb[t]
        for i in range(num_layers):
            W_i = params["w_ih0"] if i == 0 else params["w_ih_rest"][i - 1]
            pre = h_in @ W_i + hs[i] @ params["w_hh"][i] + params["b_hh"][i, 0]
            hs[i] = jnp.tanh(pre)
            h_in = hs[i]
        logits_list.append(h_in @ params["w_out"] + params["b_out"][0])
    return jnp.stack(logits_list, axis=0), jnp.stack(hs, axis=0)


def init_params(key, *, vocab_size, emb_size, hidden_size, num_layers):
    """Deterministic init matching RNN.init_weights (shapes/ranges)."""
    ir = 1.0 / math.sqrt(hidden_size)
    ks = jax.random.split(key, 6)
    embedding = jax.random.uniform(ks[0], (vocab_size, emb_size),
                                   minval=-0.1, maxval=0.1, dtype=jnp.float32)
    # PyTorch Linear weight is (out, in); store transposed (in, out).
    w_ih0 = jax.random.uniform(ks[1], (hidden_size, emb_size),
                               minval=-ir, maxval=ir, dtype=jnp.float32).T
    w_ih_rest = jnp.swapaxes(
        jax.random.uniform(ks[2], (num_layers - 1, hidden_size, hidden_size),
                           minval=-ir, maxval=ir, dtype=jnp.float32), -1, -2)
    w_hh = jnp.swapaxes(
        jax.random.uniform(ks[3], (num_layers, hidden_size, hidden_size),
                           minval=-ir, maxval=ir, dtype=jnp.float32), -1, -2)
    b_hh = jax.random.uniform(ks[4], (num_layers, 1, hidden_size),
                              minval=-ir, maxval=ir, dtype=jnp.float32)
    w_out = jax.random.uniform(ks[5], (vocab_size, hidden_size),
                               minval=-0.1, maxval=0.1, dtype=jnp.float32).T
    b_out = jnp.zeros((1, vocab_size), dtype=jnp.float32)
    return dict(embedding=embedding, w_ih0=w_ih0, w_ih_rest=w_ih_rest,
                w_hh=w_hh, b_hh=b_hh, w_out=w_out, b_out=b_out)


if __name__ == "__main__":
    # Small shapes consistent with the module's forward.
    SEQ_LEN, BATCH = 16, 16
    VOCAB, EMB, HIDDEN, LAYERS = 128, 32, 32, 2
    DP_KEEP_PROB = 1.0  # dropout is identity

    key = jax.random.PRNGKey(0)
    k_par, k_tok, k_h = jax.random.split(key, 3)
    params = init_params(k_par, vocab_size=VOCAB, emb_size=EMB,
                         hidden_size=HIDDEN, num_layers=LAYERS)

    tokens = jax.random.randint(k_tok, (SEQ_LEN, BATCH), 0, VOCAB, dtype=jnp.int32)
    hidden0 = 0.1 * jax.random.normal(k_h, (LAYERS, BATCH, HIDDEN), dtype=jnp.float32)

    ref_logits, ref_h = rnn_reference(tokens, hidden0, params,
                                      seq_len=SEQ_LEN, num_layers=LAYERS)

    common = dict(seq_len=SEQ_LEN, batch_size=BATCH, vocab_size=VOCAB,
                  emb_size=EMB, hidden_size=HIDDEN, num_layers=LAYERS)

    # f32 MXU path, forced 2x4 (batch, time) grid -> tight numerical check.
    logits32, h32 = rnn_forward(tokens, hidden0, params, matmul_dtype=jnp.float32,
                                time_chunk=4, batch_block=8, **common)
    jax.block_until_ready((logits32, h32))
    np.testing.assert_allclose(np.asarray(logits32), np.asarray(ref_logits),
                               rtol=1e-4, atol=1e-4)
    np.testing.assert_allclose(np.asarray(h32), np.asarray(ref_h),
                               rtol=1e-4, atol=1e-4)

    # bf16 MXU path with default (VMEM-budgeted) chunking -> looser check.
    logits_bf, h_bf = rnn_forward(tokens, hidden0, params,
                                  matmul_dtype=jnp.bfloat16, **common)
    jax.block_until_ready((logits_bf, h_bf))
    assert logits_bf.shape == (SEQ_LEN, BATCH, VOCAB)
    assert h_bf.shape == (LAYERS, BATCH, HIDDEN)
    np.testing.assert_allclose(np.asarray(logits_bf), np.asarray(ref_logits),
                               rtol=2e-2, atol=2e-2)
    np.testing.assert_allclose(np.asarray(h_bf), np.asarray(ref_h),
                               rtol=2e-2, atol=2e-2)

    print("KERNEL_OK")
</pallas_src>

<mosaic_0001>
module attributes {stable_mosaic.version = 11 : i64} {
  func.func @_matmul_bias_kernel(%arg0: i32, %arg1: i32, %arg2: i32, %arg3: memref<128x32xf32, #tpu.memory_space<vmem>>, %arg4: memref<32x128xf32, #tpu.memory_space<vmem>>, %arg5: memref<1x128xf32, #tpu.memory_space<vmem>>, %arg6: memref<128x128xf32, #tpu.memory_space<vmem>>, %arg7: memref<128x128xf32, #tpu.memory_space<vmem>>) attributes {dimension_semantics = [#tpu.dimension_semantics<parallel>, #tpu.dimension_semantics<parallel>, #tpu.dimension_semantics<arbitrary>], iteration_bounds = array<i64: 1, 1, 1>, scalar_prefetch = 0 : i64, scratch_operands = 1 : i64, tpu.core_type = #tpu.core_type<tc>, window_params = [{transform_indices = @transform_0, window_bounds = array<i64: 128, 32>}, {transform_indices = @transform_1, window_bounds = array<i64: 32, 128>}, {transform_indices = @transform_2, window_bounds = array<i64: 1, 128>}, {transform_indices = @transform_3, window_bounds = array<i64: 128, 128>}]} {
    %c0_i32 = arith.constant 0 : i32
    %0 = arith.cmpi eq, %arg2, %c0_i32 : i32
    %1 = arith.extui %0 : i1 to i32
    %c0_i32_0 = arith.constant 0 : i32
    %2 = arith.cmpi ne, %1, %c0_i32_0 : i32
    scf.if %2 {
      %cst_10 = arith.constant 0.000000e+00 : f32
      %12 = vector.broadcast %cst_10 : f32 to vector<128x128xf32>
      %c0_11 = arith.constant 0 : index
      %c0_12 = arith.constant 0 : index
      %13 = vector.load %arg7[%c0_11, %c0_12] : memref<128x128xf32, #tpu.memory_space<vmem>>, vector<128x128xf32>
      tpu.vector_store %arg7[%c0_11, %c0_12], %12 {strides = array<i32>} : memref<128x128xf32, #tpu.memory_space<vmem>>, vector<128x128xf32>,
    } else {
    }
    %c0 = arith.constant 0 : index
    %c0_1 = arith.constant 0 : index
    %3 = vector.load %arg7[%c0, %c0_1] : memref<128x128xf32, #tpu.memory_space<vmem>>, vector<128x128xf32>
    %c0_2 = arith.constant 0 : index
    %c0_3 = arith.constant 0 : index
    %4 = vector.load %arg3[%c0_2, %c0_3] : memref<128x32xf32, #tpu.memory_space<vmem>>, vector<128x32xf32>
    %c0_4 = arith.constant 0 : index
    %c0_5 = arith.constant 0 : index
    %5 = vector.load %arg4[%c0_4, %c0_5] : memref<32x128xf32, #tpu.memory_space<vmem>>, vector<32x128xf32>
    %cst = arith.constant dense<0.000000e+00> : vector<128x128xf32>
    %6 = tpu.matmul %4, %5, %cst {dimension_numbers = #tpu.dot_dimension_numbers<[1], [0], [0], [1], [0, 0, 1, 1], [], []>} : vector<128x32xf32>, vector<32x128xf32>, vector<128x128xf32> -> vector<128x128xf32>
    %7 = arith.addf %3, %6 : vector<128x128xf32>
    %c0_6 = arith.constant 0 : index
    %c0_7 = arith.constant 0 : index
    %8 = vector.load %arg7[%c0_6, %c0_7] : memref<128x128xf32, #tpu.memory_space<vmem>>, vector<128x128xf32>
    tpu.vector_store %arg7[%c0_6, %c0_7], %7 {strides = array<i32>} : memref<128x128xf32, #tpu.memory_space<vmem>>, vector<128x128xf32>,
    %c0_i32_8 = arith.constant 0 : i32
    %9 = arith.cmpi eq, %arg2, %c0_i32_8 : i32
    %10 = arith.extui %9 : i1 to i32
    %c0_i32_9 = arith.constant 0 : i32
    %11 = arith.cmpi ne, %10, %c0_i32_9 : i32
    scf.if %11 {
      %c0_10 = arith.constant 0 : index
      %c0_11 = arith.constant 0 : index
      %12 = vector.load %arg7[%c0_10, %c0_11] : memref<128x128xf32, #tpu.memory_space<vmem>>, vector<128x128xf32>
      %c0_12 = arith.constant 0 : index
      %c0_13 = arith.constant 0 : index
      %13 = vector.load %arg5[%c0_12, %c0_13] : memref<1x128xf32, #tpu.memory_space<vmem>>, vector<1x128xf32>
      %14 = vector.broadcast %13 : vector<1x128xf32> to vector<128x128xf32>
      %15 = arith.addf %12, %14 : vector<128x128xf32>
      %c0_14 = arith.constant 0 : index
      %c0_15 = arith.constant 0 : index
      %16 = vector.load %arg6[%c0_14, %c0_15] : memref<128x128xf32, #tpu.memory_space<vmem>>, vector<128x128xf32>
      tpu.vector_store %arg6[%c0_14, %c0_15], %15 {strides = array<i32>} : memref<128x128xf32, #tpu.memory_space<vmem>>, vector<128x128xf32>,
    } else {
    }
    return
  }
  func.func @transform_0(%arg0: i32, %arg1: i32, %arg2: i32) -> (i32, i32) {
    %c0_i32 = arith.constant 0 : i32
    return %arg0, %arg2 : i32, i32
  }
  func.func @transform_1(%arg0: i32, %arg1: i32, %arg2: i32) -> (i32, i32) {
    %c0_i32 = arith.constant 0 : i32
    return %arg2, %arg1 : i32, i32
  }
  func.func @transform_2(%arg0: i32, %arg1: i32, %arg2: i32) -> (i32, i32) {
    %c0_i32 = arith.constant 0 : i32
    %c0_i32_0 = arith.constant 0 : i32
    return %c0_i32, %arg1 : i32, i32
  }
  func.func @transform_3(%arg0: i32, %arg1: i32, %arg2: i32) -> (i32, i32) {
    %c0_i32 = arith.constant 0 : i32
    return %arg0, %arg1 : i32, i32
  }
}

</mosaic_0001>

<llo_original>
// kernel: tpu_custom_call.1
$region0: #{tpu_custom_call.1}
  #allocation0 [shape = 'u32[]', space=smem, size = 0x4, offset = 0x4, fixed_abs, tag = 'smem constant byte address 0x4 - core index']
  #allocation1 [shape = 'u32[72,128]{1,0:T(1,128)}', space=vmem, size = 0x9000, scoped, tag = 'internal scratch']
  #allocation2 [shape = 'f32[128,128]{1,0:T(8,128)}', space=vmem, size = 0x10000, scoped, tag = 'scratch operand']
  %s0 = inlined_call_operand.vmem [shape: f32[128,32], index: 0, kind: input, shape index: {}]
  %s1 = inlined_call_operand.vmem [shape: f32[32,128], index: 1, kind: input, shape index: {}]
  %s2 = inlined_call_operand.vmem [shape: f32[1,128], index: 2, kind: input, shape index: {}]
  %s3 = inlined_call_operand.hbm [shape: f32[128,128], index: 3, kind: output, shape index: {}]
  %s4 = sld [smem:[#allocation0]]
  $region30: #{tpu_custom_call.1} parent=0
    _
  %s6 = ssub.s32 1, %s4
  %s7 = scalar_select 0, %s6, %s4
  $region1: #{tpu_custom_call.1} parent=0
    #allocation3 [shape = 'u8[65536]{0}', space=vmem, size = 0x10000, scoped, tag = 'output window, operand 0, single buffered']
    #allocation4 [shape = 's32[1]{0}', space=sflag, size = 0x4, scoped, tag = 'scoped memory for tpu_custom_call.1']
    %8 = vsyncpa [#allocation4], 0
    // Predicated region
    $region2: #{tpu_custom_call.1} parent=1 // pred_check
      _
    $region3: #{tpu_custom_call.1} parent=1 // pred_check_branch
      %10 = sbr.rel (0) target = $region5
    $region4: #{tpu_custom_call.1} parent=1 // pred_region
      _
    $region5: #{tpu_custom_call.1} parent=1 // pred_fallthru
      _
    // Predicated region
    $region6: #{tpu_custom_call.1} parent=1 // pred_check
      _
    $region7: #{tpu_custom_call.1} parent=1 // pred_check_branch
      %12 = sbr.rel (0) target = $region9
    $region8: #{tpu_custom_call.1} parent=1 // pred_region
      _
    $region9: #{tpu_custom_call.1} parent=1 // pred_fallthru
      _
    // Predicated region
    $region10: #{tpu_custom_call.1} parent=1 // pred_check
      _
    $region11: #{tpu_custom_call.1} parent=1 // pred_check_branch
      %14 = sbr.rel (0) target = $region13
    $region12: #{tpu_custom_call.1} parent=1 // pred_region
      _
    $region13: #{tpu_custom_call.1} parent=1 // pred_fallthru
      _
    %p15 = scmp.eq.s32.totalorder 0, 0
    // Predicated region
    $region14: #{tpu_custom_call.1} parent=1 // pred_check
      %p16 = pneg %p15
    $region15: #{tpu_custom_call.1} parent=1 // pred_check_branch
      %18 = sbr.rel (%p16) target = $region17
    $region16: #{tpu_custom_call.1} parent=1 // pred_region
      %19 = vst [vmem:[#allocation2] sm:$0xff] 0.0
      %20 = vst [vmem:[#allocation2 + $0x8] sm:$0xff] 0.0
      %21 = vst [vmem:[#allocation2 + $0x10] sm:$0xff] 0.0
      %22 = vst [vmem:[#allocation2 + $0x18] sm:$0xff] 0.0
      %23 = vst [vmem:[#allocation2 + $0x20] sm:$0xff] 0.0
      %24 = vst [vmem:[#allocation2 + $0x28] sm:$0xff] 0.0
      %25 = vst [vmem:[#allocation2 + $0x30] sm:$0xff] 0.0
      %26 = vst [vmem:[#allocation2 + $0x38] sm:$0xff] 0.0
      %27 = vst [vmem:[#allocation2 + $0x40] sm:$0xff] 0.0
      %28 = vst [vmem:[#allocation2 + $0x48] sm:$0xff] 0.0
      %29 = vst [vmem:[#allocation2 + $0x50] sm:$0xff] 0.0
      %30 = vst [vmem:[#allocation2 + $0x58] sm:$0xff] 0.0
      %31 = vst [vmem:[#allocation2 + $0x60] sm:$0xff] 0.0
      %32 = vst [vmem:[#allocation2 + $0x68] sm:$0xff] 0.0
      %33 = vst [vmem:[#allocation2 + $0x70] sm:$0xff] 0.0
      %34 = vst [vmem:[#allocation2 + $0x78] sm:$0xff] 0.0
    $region17: #{tpu_custom_call.1} parent=1 // pred_fallthru
      _
    %v35 = vld [vmem:[#allocation2] sm:$0xff]
    %v36 = vld [vmem:[#allocation2 + $0x8] sm:$0xff]
    %v37 = vld [vmem:[#allocation2 + $0x10] sm:$0xff]
    %v38 = vld [vmem:[#allocation2 + $0x18] sm:$0xff]
    %v39 = vld [vmem:[#allocation2 + $0x20] sm:$0xff]
    %v40 = vld [vmem:[#allocation2 + $0x28] sm:$0xff]
    %v41 = vld [vmem:[#allocation2 + $0x30] sm:$0xff]
    %v42 = vld [vmem:[#allocation2 + $0x38] sm:$0xff]
    %v43 = vld [vmem:[#allocation2 + $0x40] sm:$0xff]
    %v44 = vld [vmem:[#allocation2 + $0x48] sm:$0xff]
    %v45 = vld [vmem:[#allocation2 + $0x50] sm:$0xff]
    %v46 = vld [vmem:[#allocation2 + $0x58] sm:$0xff]
    %v47 = vld [vmem:[#allocation2 + $0x60] sm:$0xff]
    %v48 = vld [vmem:[#allocation2 + $0x68] sm:$0xff]
    %v49 = vld [vmem:[#allocation2 + $0x70] sm:$0xff]
    %v50 = vld [vmem:[#allocation2 + $0x78] sm:$0xff]
    %v51 = vld [vmem:[%s0] sm:$0xff]
    %v52 = vld [vmem:[%s0 + $0x8] sm:$0xff]
    %v53 = vld [vmem:[%s0 + $0x10] sm:$0xff]
    %v54 = vld [vmem:[%s0 + $0x18] sm:$0xff]
    %v55 = vld [vmem:[%s0 + $0x20] sm:$0xff]
    %v56 = vld [vmem:[%s0 + $0x28] sm:$0xff]
    %v57 = vld [vmem:[%s0 + $0x30] sm:$0xff]
    %v58 = vld [vmem:[%s0 + $0x38] sm:$0xff]
    %v59 = vld [vmem:[%s0 + $0x40] sm:$0xff]
    %v60 = vld [vmem:[%s0 + $0x48] sm:$0xff]
    %v61 = vld [vmem:[%s0 + $0x50] sm:$0xff]
    %v62 = vld [vmem:[%s0 + $0x58] sm:$0xff]
    %v63 = vld [vmem:[%s0 + $0x60] sm:$0xff]
    %v64 = vld [vmem:[%s0 + $0x68] sm:$0xff]
    %v65 = vld [vmem:[%s0 + $0x70] sm:$0xff]
    %v66 = vld [vmem:[%s0 + $0x78] sm:$0xff]
    %v67 = vld [vmem:[%s1] sm:$0xff]
    %v68 = vld [vmem:[%s1 + $0x8] sm:$0xff]
    %v69 = vld [vmem:[%s1 + $0x10] sm:$0xff]
    %v70 = vld [vmem:[%s1 + $0x18] sm:$0xff]
    %vm71 = vcmask 261120
    %v73 = vsel %vm71, %v51, 0
    %v76 = vsel %vm71, %v52, 0
    %v79 = vsel %vm71, %v53, 0
    %v82 = vsel %vm71, %v54, 0
    %v85 = vsel %vm71, %v55, 0
    %v88 = vsel %vm71, %v56, 0
    %v91 = vsel %vm71, %v57, 0
    %v94 = vsel %vm71, %v58, 0
    %v97 = vsel %vm71, %v59, 0
    %v100 = vsel %vm71, %v60, 0
    %v103 = vsel %vm71, %v61, 0
    %v106 = vsel %vm71, %v62, 0
    %v109 = vsel %vm71, %v63, 0
    %v112 = vsel %vm71, %v64, 0
    %v115 = vsel %vm71, %v65, 0
    %v118 = vsel %vm71, %v66, 0
    %120 = vmatpush.msra.mxu0 0.0
    %121 = vmatpush.msra.mxu0 0.0
    %122 = vmatpush.msra.mxu0 0.0
    %123 = vmatpush.msra.mxu0 0.0
    %124 = vmatpush.msra.mxu0 0.0
    %125 = vmatpush.msra.mxu0 0.0
    %126 = vmatpush.msra.mxu0 0.0
    %127 = vmatpush.msra.mxu0 0.0
    %128 = vmatpush.msra.mxu0 0.0
    %129 = vmatpush.msra.mxu0 0.0
    %130 = vmatpush.msra.mxu0 0.0
    %131 = vmatpush.msra.mxu0 0.0
    %132 = vmatpush.msra.mxu0 %v70
    %133 = vmatpush.msra.mxu0 %v69
    %134 = vmatpush.msra.mxu0 %v68
    %135 = vmatpush.msra.mxu0 %v67
    %136 = vmatmul.f32.gmra.mxu0 %v73
    %v137 = vpop.f32.mrf.mxu0
    %v138 = vadd.f32 0.0, %v137
    %139 = vmatmul.f32.gmra.mxu0 %v76
    %v140 = vpop.f32.mrf.mxu0
    %v141 = vadd.f32 0.0, %v140
    %142 = vmatmul.f32.gmra.mxu0 %v79
    %v143 = vpop.f32.mrf.mxu0
    %v144 = vadd.f32 0.0, %v143
    %145 = vmatmul.f32.gmra.mxu0 %v82
    %v146 = vpop.f32.mrf.mxu0
    %v147 = vadd.f32 0.0, %v146
    %148 = vmatmul.f32.gmra.mxu0 %v85
    %v149 = vpop.f32.mrf.mxu0
    %v150 = vadd.f32 0.0, %v149
    %151 = vmatmul.f32.gmra.mxu0 %v88
    %v152 = vpop.f32.mrf.mxu0
    %v153 = vadd.f32 0.0, %v152
    %154 = vmatmul.f32.gmra.mxu0 %v91
    %v155 = vpop.f32.mrf.mxu0
    %v156 = vadd.f32 0.0, %v155
    %157 = vmatmul.f32.gmra.mxu0 %v94
    %v158 = vpop.f32.mrf.mxu0
    %v159 = vadd.f32 0.0, %v158
    %160 = vmatmul.f32.gmra.mxu0 %v97
    %v161 = vpop.f32.mrf.mxu0
    %v162 = vadd.f32 0.0, %v161
    %163 = vmatmul.f32.gmra.mxu0 %v100
    %v164 = vpop.f32.mrf.mxu0
    %v165 = vadd.f32 0.0, %v164
    %166 = vmatmul.f32.gmra.mxu0 %v103
    %v167 = vpop.f32.mrf.mxu0
    %v168 = vadd.f32 0.0, %v167
    %169 = vmatmul.f32.gmra.mxu0 %v106
    %v170 = vpop.f32.mrf.mxu0
    %v171 = vadd.f32 0.0, %v170
    %172 = vmatmul.f32.gmra.mxu0 %v109
    %v173 = vpop.f32.mrf.mxu0
    %v174 = vadd.f32 0.0, %v173
    %175 = vmatmul.f32.gmra.mxu0 %v112
    %v176 = vpop.f32.mrf.mxu0
    %v177 = vadd.f32 0.0, %v176
    %178 = vmatmul.f32.gmra.mxu0 %v115
    %v179 = vpop.f32.mrf.mxu0
    %v180 = vadd.f32 0.0, %v179
    %181 = vmatmul.f32.gmra.mxu0 %v118
    %v182 = vpop.f32.mrf.mxu0
    %v183 = vadd.f32 0.0, %v182
    %184 = vdwg.mxu0
    %v185 = vadd.f32 %v35, %v138
    %v186 = vadd.f32 %v36, %v141
    %v187 = vadd.f32 %v37, %v144
    %v188 = vadd.f32 %v38, %v147
    %v189 = vadd.f32 %v39, %v150
    %v190 = vadd.f32 %v40, %v153
    %v191 = vadd.f32 %v41, %v156
    %v192 = vadd.f32 %v42, %v159
    %v193 = vadd.f32 %v43, %v162
    %v194 = vadd.f32 %v44, %v165
    %v195 = vadd.f32 %v45, %v168
    %v196 = vadd.f32 %v46, %v171
    %v197 = vadd.f32 %v47, %v174
    %v198 = vadd.f32 %v48, %v177
    %v199 = vadd.f32 %v49, %v180
    %v200 = vadd.f32 %v50, %v183
    %201 = vst [vmem:[#allocation2] sm:$0xff] %v185
    %202 = vst [vmem:[#allocation2 + $0x8] sm:$0xff] %v186
    %203 = vst [vmem:[#allocation2 + $0x10] sm:$0xff] %v187
    %204 = vst [vmem:[#allocation2 + $0x18] sm:$0xff] %v188
    %205 = vst [vmem:[#allocation2 + $0x20] sm:$0xff] %v189
    %206 = vst [vmem:[#allocation2 + $0x28] sm:$0xff] %v190
    %207 = vst [vmem:[#allocation2 + $0x30] sm:$0xff] %v191
    %208 = vst [vmem:[#allocation2 + $0x38] sm:$0xff] %v192
    %209 = vst [vmem:[#allocation2 + $0x40] sm:$0xff] %v193
    %210 = vst [vmem:[#allocation2 + $0x48] sm:$0xff] %v194
    %211 = vst [vmem:[#allocation2 + $0x50] sm:$0xff] %v195
    %212 = vst [vmem:[#allocation2 + $0x58] sm:$0xff] %v196
    %213 = vst [vmem:[#allocation2 + $0x60] sm:$0xff] %v197
    %214 = vst [vmem:[#allocation2 + $0x68] sm:$0xff] %v198
    %215 = vst [vmem:[#allocation2 + $0x70] sm:$0xff] %v199
    %216 = vst [vmem:[#allocation2 + $0x78] sm:$0xff] %v200
    // Predicated region
    $region18: #{tpu_custom_call.1} parent=1 // pred_check
      %p217 = pneg %p15
    $region19: #{tpu_custom_call.1} parent=1 // pred_check_branch
      %219 = sbr.rel (%p217) target = $region21
    $region20: #{tpu_custom_call.1} parent=1 // pred_region
      %v220 = vld [vmem:[#allocation2] sm:$0xff]
      %v221 = vld [vmem:[#allocation2 + $0x8] sm:$0xff]
      %v222 = vld [vmem:[#allocation2 + $0x10] sm:$0xff]
      %v223 = vld [vmem:[#allocation2 + $0x18] sm:$0xff]
      %v224 = vld [vmem:[#allocation2 + $0x20] sm:$0xff]
      %v225 = vld [vmem:[#allocation2 + $0x28] sm:$0xff]
      %v226 = vld [vmem:[#allocation2 + $0x30] sm:$0xff]
      %v227 = vld [vmem:[#allocation2 + $0x38] sm:$0xff]
      %v228 = vld [vmem:[#allocation2 + $0x40] sm:$0xff]
      %v229 = vld [vmem:[#allocation2 + $0x48] sm:$0xff]
      %v230 = vld [vmem:[#allocation2 + $0x50] sm:$0xff]
      %v231 = vld [vmem:[#allocation2 + $0x58] sm:$0xff]
      %v232 = vld [vmem:[#allocation2 + $0x60] sm:$0xff]
      %v233 = vld [vmem:[#allocation2 + $0x68] sm:$0xff]
      %v234 = vld [vmem:[#allocation2 + $0x70] sm:$0xff]
      %v235 = vld [vmem:[#allocation2 + $0x78] sm:$0xff]
      %v236 = vld [vmem:[%s2] sm:$0x1]
      %v238 = vperm.slane %v236, 0
      %v240 = vadd.f32 %v220, %v238
      %v241 = vadd.f32 %v221, %v238
      %v242 = vadd.f32 %v222, %v238
      %v243 = vadd.f32 %v223, %v238
      %v244 = vadd.f32 %v224, %v238
      %v245 = vadd.f32 %v225, %v238
      %v246 = vadd.f32 %v226, %v238
      %v247 = vadd.f32 %v227, %v238
      %v248 = vadd.f32 %v228, %v238
      %v249 = vadd.f32 %v229, %v238
      %v250 = vadd.f32 %v230, %v238
      %v251 = vadd.f32 %v231, %v238
      %v252 = vadd.f32 %v232, %v238
      %v253 = vadd.f32 %v233, %v238
      %v254 = vadd.f32 %v234, %v238
      %v255 = vadd.f32 %v235, %v238
      %256 = vst [vmem:[#allocation3] sm:$0xff] %v240
      %257 = vst [vmem:[#allocation3 + $0x8] sm:$0xff] %v241
      %258 = vst [vmem:[#allocation3 + $0x10] sm:$0xff] %v242
      %259 = vst [vmem:[#allocation3 + $0x18] sm:$0xff] %v243
      %260 = vst [vmem:[#allocation3 + $0x20] sm:$0xff] %v244
      %261 = vst [vmem:[#allocation3 + $0x28] sm:$0xff] %v245
      %262 = vst [vmem:[#allocation3 + $0x30] sm:$0xff] %v246
      %263 = vst [vmem:[#allocation3 + $0x38] sm:$0xff] %v247
      %264 = vst [vmem:[#allocation3 + $0x40] sm:$0xff] %v248
      %265 = vst [vmem:[#allocation3 + $0x48] sm:$0xff] %v249
      %266 = vst [vmem:[#allocation3 + $0x50] sm:$0xff] %v250
      %267 = vst [vmem:[#allocation3 + $0x58] sm:$0xff] %v251
      %268 = vst [vmem:[#allocation3 + $0x60] sm:$0xff] %v252
      %269 = vst [vmem:[#allocation3 + $0x68] sm:$0xff] %v253
      %270 = vst [vmem:[#allocation3 + $0x70] sm:$0xff] %v254
      %271 = vst [vmem:[#allocation3 + $0x78] sm:$0xff] %v255
    $region21: #{tpu_custom_call.1} parent=1 // pred_fallthru
      _
    // Predicated region
    $region22: #{tpu_custom_call.1} parent=1 // pred_check
      _
    $region23: #{tpu_custom_call.1} parent=1 // pred_check_branch
      %273 = sbr.rel (0) target = $region25
    $region24: #{tpu_custom_call.1} parent=1 // pred_region
      %275 = vsyncadd [#allocation4], 0
      %s276 = sshll.u32 [#allocation3], 4
      %s277 = int_to_ptr.vmem [resolvable:$true] %s276
      %s278 = sshll.u32 %s3, 4
      %s279 = int_to_ptr.hbm [resolvable:$true] %s278
      %284 = dma.vmem_to_hbm [thread:$0]  %s277, 2048, %s279, [#allocation4], 128, 128, 8
    $region25: #{tpu_custom_call.1} parent=1 // pred_fallthru
      _
    // Predicated region
    $region26: #{tpu_custom_call.1} parent=1 // pred_check
      _
    $region27: #{tpu_custom_call.1} parent=1 // pred_check_branch
      %286 = sbr.rel (0) target = $region29
    $region28: #{tpu_custom_call.1} parent=1 // pred_region
      %288 = dma.done [#allocation4], 2048
    $region29: #{tpu_custom_call.1} parent=1 // pred_fallthru
      _
    %289 = vsyncpa [#allocation4], 1

</llo_original>
